<compile_context>
chip_gen: v7x
topology: tpu7x:2x2x1
jax: 0.10.0
libtpu: 0.0.40
codegen_flags: <defaults>
</compile_context>

<pallas_src>
import functools

import numpy as np

import jax
import jax.numpy as jnp
from jax import lax
from jax.experimental import pallas as pl
from jax.experimental.pallas import tpu as pltpu


def _round_up(x, m):
    return ((x + m - 1) // m) * m


# ---------------------------------------------------------------------------
# Fused kernel: K-tiled encoder (bf16 MXU, f32 acc) + class-mean prototypes
# (bf16 MXU, f32 scale) + negative squared Euclidean distances (MXU).
# ---------------------------------------------------------------------------
def _fused_protonet_kernel(sup_x_ref, qry_x_ref, w_ref, b_ref, avg_ref,
                           o_ref, acc_sup_ref, acc_qry_ref, *, inv_s):
    k = pl.program_id(1)

    @pl.when(k == 0)
    def _():
        acc_sup_ref[...] = jnp.zeros_like(acc_sup_ref)
        acc_qry_ref[...] = jnp.zeros_like(acc_qry_ref)

    # --- encoder partial products for this K tile (bf16 MXU, f32 accumulate)
    w_tile = w_ref[...]
    acc_sup_ref[...] += jnp.dot(sup_x_ref[...], w_tile,
                                preferred_element_type=jnp.float32)
    acc_qry_ref[...] += jnp.dot(qry_x_ref[...], w_tile,
                                preferred_element_type=jnp.float32)

    @pl.when(k == pl.num_programs(1) - 1)
    def _():
        # --- bias + ReLU epilogue in f32
        bias = b_ref[...]
        feat_s = jnp.maximum(acc_sup_ref[...] + bias, 0.0)   # (N_sup_pad, D_pad)
        feat_q = jnp.maximum(acc_qry_ref[...] + bias, 0.0)   # (tq,        D_pad)

        # --- class prototypes: bf16 sum-matmul on the MXU, 1/S scale in f32.
        #     avg[c, c*S + s] = 1.0 (bf16-exact); padded rows/cols are zero.
        proto = jnp.dot(avg_ref[...], feat_s.astype(jnp.bfloat16),
                        preferred_element_type=jnp.float32) * inv_s  # (C_pad, D_pad)

        # --- negative squared distance:  -(||q||^2 + ||p||^2 - 2 q.p)
        qnorm = jnp.sum(feat_q * feat_q, axis=1, keepdims=True)       # (tq, 1)
        ones_row = jnp.ones((1, proto.shape[1]), jnp.float32)
        pnorm = lax.dot_general(ones_row, proto * proto,
                                (((1,), (1,)), ((), ())),
                                preferred_element_type=jnp.float32)   # (1, C_pad)
        gram = lax.dot_general(feat_q, proto,
                               (((1,), (1,)), ((), ())),
                               preferred_element_type=jnp.float32)    # (tq, C_pad)
        scores = -(qnorm + pnorm - 2.0 * gram)
        # true -distance is never positive; clamp the f32 cancellation residue
        o_ref[...] = jnp.minimum(scores, 0.0).astype(o_ref.dtype)


# ---------------------------------------------------------------------------
# Wrapper (mirrors ProtoNetBasedFSLSolution.forward)
# ---------------------------------------------------------------------------
@jax.jit
def protonet_forward(support_set, query_set, w, b):
    """support_set: (n_classes, S, C, H, W); query_set: (Q, C, H, W);
    w: (F, D); b: (1, D) or (D,). Returns (Q, n_classes) scores."""
    n_classes, S = support_set.shape[0], support_set.shape[1]
    Q = query_set.shape[0]
    F = int(np.prod(support_set.shape[2:]))
    D = w.shape[-1]

    n_sup = n_classes * S
    n_sup_pad = _round_up(n_sup, 8)          # sublane-align support rows
    d_pad = _round_up(D, 128)                # lane-align feature dim
    c_pad = _round_up(n_classes, 128)        # lane-dense (Q, classes) output

    # contraction dim: pad to 256 (full MXU width on v6e/v7x), tile in K
    f_pad = _round_up(F, 256)
    tk = 512 if f_pad % 512 == 0 else 256
    n_k = f_pad // tk

    # query rows: one tile for small Q, 256-row tiles (parallel axis) otherwise
    if Q <= 256:
        tq = _round_up(Q, 8)
        q_pad = tq
    else:
        tq = 256
        q_pad = _round_up(Q, tq)
    n_q = q_pad // tq

    # --- build padded operands directly in their kernel dtypes (no f32 slab)
    sup_x = (jnp.zeros((n_sup_pad, f_pad), jnp.bfloat16)
             .at[:n_sup, :F].set(support_set.reshape(n_sup, F)
                                 .astype(jnp.bfloat16)))
    qry_x = (jnp.zeros((q_pad, f_pad), jnp.bfloat16)
             .at[:Q, :F].set(query_set.reshape(Q, F).astype(jnp.bfloat16)))
    w_pad = (jnp.zeros((f_pad, d_pad), jnp.bfloat16)
             .at[:F, :D].set(w.astype(jnp.bfloat16)))
    b_pad = (jnp.zeros((1, d_pad), jnp.float32)
             .at[:, :D].set(jnp.reshape(b, (1, D)).astype(jnp.float32)))

    # class-mean summation matrix (trace-time constant, bf16-exact 1.0 entries);
    # padded class rows / padded support columns are zero -> padding never leaks.
    avg_np = np.zeros((c_pad, n_sup_pad), np.float32)
    for c in range(n_classes):
        avg_np[c, c * S:(c + 1) * S] = 1.0
    avg = jnp.asarray(avg_np, dtype=jnp.bfloat16)

    flops = (2 * (n_sup_pad * n_q + q_pad) * f_pad * d_pad
             + 2 * c_pad * n_sup_pad * d_pad * n_q
             + 2 * q_pad * d_pad * c_pad
             + 2 * q_pad * d_pad)
    bytes_accessed = (2 * (n_sup_pad * f_pad * n_q + q_pad * f_pad
                           + f_pad * d_pad * n_q + c_pad * n_sup_pad * n_q)
                      + 4 * (d_pad * n_q + q_pad * c_pad))
    cost = pl.CostEstimate(flops=flops, transcendentals=0,
                           bytes_accessed=bytes_accessed)

    kernel = functools.partial(_fused_protonet_kernel, inv_s=1.0 / S)
    out_pad = pl.pallas_call(
        kernel,
        out_shape=jax.ShapeDtypeStruct((q_pad, c_pad), jnp.float32),
        grid=(n_q, n_k),
        in_specs=[
            pl.BlockSpec((n_sup_pad, tk), lambda qi, k: (0, k)),   # support rows
            pl.BlockSpec((tq, tk), lambda qi, k: (qi, k)),         # query rows
            pl.BlockSpec((tk, d_pad), lambda qi, k: (k, 0)),       # encoder weight
            pl.BlockSpec((1, d_pad), lambda qi, k: (0, 0)),        # encoder bias
            pl.BlockSpec((c_pad, n_sup_pad), lambda qi, k: (0, 0)),  # class-sum matrix
        ],
        out_specs=pl.BlockSpec((tq, c_pad), lambda qi, k: (qi, 0)),
        scratch_shapes=[
            pltpu.VMEM((n_sup_pad, d_pad), jnp.float32),   # support feature acc
            pltpu.VMEM((tq, d_pad), jnp.float32),          # query feature acc
        ],
        compiler_params=pltpu.CompilerParams(
            dimension_semantics=("parallel", "arbitrary")),
        cost_estimate=cost,
    )(sup_x, qry_x, w_pad, b_pad, avg)

    # slice the lane-dense padded slab back to the logical (Q, n_classes) result
    return out_pad[:Q, :n_classes]


if __name__ == "__main__":
    n_classes, S, Q = 5, 5, 8
    C, H, W, D = 4, 16, 16, 32
    F = C * H * W

    key = jax.random.PRNGKey(0)
    k1, k2, k3, k4 = jax.random.split(key, 4)
    support_set = jax.random.normal(k1, (n_classes, S, C, H, W), jnp.float32)
    query_set = jax.random.normal(k2, (Q, C, H, W), jnp.float32)
    w = jax.random.normal(k3, (F, D), jnp.float32) * 0.02
    b = jax.random.normal(k4, (1, D), jnp.float32) * 0.02

    out = protonet_forward(support_set, query_set, w, b)
    out = jax.block_until_ready(out)
    assert out.shape == (Q, n_classes), out.shape
    assert out.dtype == jnp.float32

    # reference (same bf16 encoder cast, f32 math, direct squared-distance form)
    def _enc(x):
        h = jnp.dot(x.reshape(x.shape[0], -1).astype(jnp.bfloat16),
                    w.astype(jnp.bfloat16),
                    preferred_element_type=jnp.float32)
        return jnp.maximum(h + b, 0.0)

    sup_feat = _enc(support_set.reshape(n_classes * S, C, H, W)).reshape(
        n_classes, S, D)
    qry_feat = _enc(query_set)
    proto = jnp.mean(sup_feat, axis=1)
    ref = -jnp.sum((proto[None, :, :] - qry_feat[:, None, :]) ** 2, axis=2)
    assert jnp.allclose(out, ref, rtol=5e-2, atol=5e-1), \
        float(jnp.max(jnp.abs(out - ref)))

    print("KERNEL_OK")
</pallas_src>

<mosaic_0001>
module attributes {stable_mosaic.version = 11 : i64} {
  func.func @_fused_protonet_kernel(%arg0: i32, %arg1: i32, %arg2: memref<32x512xbf16, #tpu.memory_space<vmem>>, %arg3: memref<8x512xbf16, #tpu.memory_space<vmem>>, %arg4: memref<512x128xbf16, #tpu.memory_space<vmem>>, %arg5: memref<1x128xf32, #tpu.memory_space<vmem>>, %arg6: memref<128x32xbf16, #tpu.memory_space<vmem>>, %arg7: memref<8x128xf32, #tpu.memory_space<vmem>>, %arg8: memref<32x128xf32, #tpu.memory_space<vmem>>, %arg9: memref<8x128xf32, #tpu.memory_space<vmem>>) attributes {dimension_semantics = [#tpu.dimension_semantics<parallel>, #tpu.dimension_semantics<arbitrary>], iteration_bounds = array<i64: 1, 2>, scalar_prefetch = 0 : i64, scratch_operands = 2 : i64, tpu.core_type = #tpu.core_type<tc>, window_params = [{transform_indices = @transform_0, window_bounds = array<i64: 32, 512>}, {transform_indices = @transform_1, window_bounds = array<i64: 8, 512>}, {transform_indices = @transform_2, window_bounds = array<i64: 512, 128>}, {pipeline_mode = #tpu.pipeline_mode<synchronous>, transform_indices = @transform_3, window_bounds = array<i64: 1, 128>}, {pipeline_mode = #tpu.pipeline_mode<synchronous>, transform_indices = @transform_4, window_bounds = array<i64: 128, 32>}, {transform_indices = @transform_5, window_bounds = array<i64: 8, 128>}]} {
    %c0_i32 = arith.constant 0 : i32
    %0 = arith.cmpi eq, %arg1, %c0_i32 : i32
    %1 = arith.extui %0 : i1 to i32
    %c0_i32_0 = arith.constant 0 : i32
    %2 = arith.cmpi ne, %1, %c0_i32_0 : i32
    scf.if %2 {
      %cst_16 = arith.constant 0.000000e+00 : f32
      %17 = vector.broadcast %cst_16 : f32 to vector<32x128xf32>
      %c0_17 = arith.constant 0 : index
      %c0_18 = arith.constant 0 : index
      %18 = vector.load %arg8[%c0_17, %c0_18] : memref<32x128xf32, #tpu.memory_space<vmem>>, vector<32x128xf32>
      tpu.vector_store %arg8[%c0_17, %c0_18], %17 {strides = array<i32>} : memref<32x128xf32, #tpu.memory_space<vmem>>, vector<32x128xf32>,
      %cst_19 = arith.constant 0.000000e+00 : f32
      %19 = vector.broadcast %cst_19 : f32 to vector<8x128xf32>
      %c0_20 = arith.constant 0 : index
      %c0_21 = arith.constant 0 : index
      %20 = vector.load %arg9[%c0_20, %c0_21] : memref<8x128xf32, #tpu.memory_space<vmem>>, vector<8x128xf32>
      tpu.vector_store %arg9[%c0_20, %c0_21], %19 {strides = array<i32>} : memref<8x128xf32, #tpu.memory_space<vmem>>, vector<8x128xf32>,
    } else {
    }
    %c0 = arith.constant 0 : index
    %c0_1 = arith.constant 0 : index
    %3 = vector.load %arg4[%c0, %c0_1] : memref<512x128xbf16, #tpu.memory_space<vmem>>, vector<512x128xbf16>
    %c0_2 = arith.constant 0 : index
    %c0_3 = arith.constant 0 : index
    %4 = vector.load %arg8[%c0_2, %c0_3] : memref<32x128xf32, #tpu.memory_space<vmem>>, vector<32x128xf32>
    %c0_4 = arith.constant 0 : index
    %c0_5 = arith.constant 0 : index
    %5 = vector.load %arg2[%c0_4, %c0_5] : memref<32x512xbf16, #tpu.memory_space<vmem>>, vector<32x512xbf16>
    %cst = arith.constant dense<0.000000e+00> : vector<32x128xf32>
    %6 = tpu.matmul %5, %3, %cst {dimension_numbers = #tpu.dot_dimension_numbers<[1], [0], [0], [1], [0, 0, 1, 1], [], []>} : vector<32x512xbf16>, vector<512x128xbf16>, vector<32x128xf32> -> vector<32x128xf32>
    %7 = arith.addf %4, %6 : vector<32x128xf32>
    %c0_6 = arith.constant 0 : index
    %c0_7 = arith.constant 0 : index
    %8 = vector.load %arg8[%c0_6, %c0_7] : memref<32x128xf32, #tpu.memory_space<vmem>>, vector<32x128xf32>
    tpu.vector_store %arg8[%c0_6, %c0_7], %7 {strides = array<i32>} : memref<32x128xf32, #tpu.memory_space<vmem>>, vector<32x128xf32>,
    %c0_8 = arith.constant 0 : index
    %c0_9 = arith.constant 0 : index
    %9 = vector.load %arg9[%c0_8, %c0_9] : memref<8x128xf32, #tpu.memory_space<vmem>>, vector<8x128xf32>
    %c0_10 = arith.constant 0 : index
    %c0_11 = arith.constant 0 : index
    %10 = vector.load %arg3[%c0_10, %c0_11] : memref<8x512xbf16, #tpu.memory_space<vmem>>, vector<8x512xbf16>
    %cst_12 = arith.constant dense<0.000000e+00> : vector<8x128xf32>
    %11 = tpu.matmul %10, %3, %cst_12 {dimension_numbers = #tpu.dot_dimension_numbers<[1], [0], [0], [1], [0, 0, 1, 1], [], []>} : vector<8x512xbf16>, vector<512x128xbf16>, vector<8x128xf32> -> vector<8x128xf32>
    %12 = arith.addf %9, %11 : vector<8x128xf32>
    %c0_13 = arith.constant 0 : index
    %c0_14 = arith.constant 0 : index
    %13 = vector.load %arg9[%c0_13, %c0_14] : memref<8x128xf32, #tpu.memory_space<vmem>>, vector<8x128xf32>
    tpu.vector_store %arg9[%c0_13, %c0_14], %12 {strides = array<i32>} : memref<8x128xf32, #tpu.memory_space<vmem>>, vector<8x128xf32>,
    %c1_i32 = arith.constant 1 : i32
    %14 = arith.cmpi eq, %arg1, %c1_i32 : i32
    %15 = arith.extui %14 : i1 to i32
    %c0_i32_15 = arith.constant 0 : i32
    %16 = arith.cmpi ne, %15, %c0_i32_15 : i32
    scf.if %16 {
      %c0_16 = arith.constant 0 : index
      %c0_17 = arith.constant 0 : index
      %17 = vector.load %arg5[%c0_16, %c0_17] : memref<1x128xf32, #tpu.memory_space<vmem>>, vector<1x128xf32>
      %c0_18 = arith.constant 0 : index
      %c0_19 = arith.constant 0 : index
      %18 = vector.load %arg8[%c0_18, %c0_19] : memref<32x128xf32, #tpu.memory_space<vmem>>, vector<32x128xf32>
      %19 = vector.broadcast %17 : vector<1x128xf32> to vector<32x128xf32>
      %20 = arith.addf %18, %19 : vector<32x128xf32>
      %cst_20 = arith.constant 0.000000e+00 : f32
      %21 = vector.broadcast %cst_20 : f32 to vector<32x128xf32>
      %22 = arith.maximumf %20, %21 : vector<32x128xf32>
      %c0_21 = arith.constant 0 : index
      %c0_22 = arith.constant 0 : index
      %23 = vector.load %arg9[%c0_21, %c0_22] : memref<8x128xf32, #tpu.memory_space<vmem>>, vector<8x128xf32>
      %24 = vector.broadcast %17 : vector<1x128xf32> to vector<8x128xf32>
      %25 = arith.addf %23, %24 : vector<8x128xf32>
      %cst_23 = arith.constant 0.000000e+00 : f32
      %26 = vector.broadcast %cst_23 : f32 to vector<8x128xf32>
      %27 = arith.maximumf %25, %26 : vector<8x128xf32>
      %c0_24 = arith.constant 0 : index
      %c0_25 = arith.constant 0 : index
      %28 = vector.load %arg6[%c0_24, %c0_25] : memref<128x32xbf16, #tpu.memory_space<vmem>>, vector<128x32xbf16>
      %29 = arith.truncf %22 : vector<32x128xf32> to vector<32x128xbf16>
      %cst_26 = arith.constant dense<0.000000e+00> : vector<128x128xf32>
      %30 = tpu.matmul %28, %29, %cst_26 {dimension_numbers = #tpu.dot_dimension_numbers<[1], [0], [0], [1], [0, 0, 1, 1], [], []>} : vector<128x32xbf16>, vector<32x128xbf16>, vector<128x128xf32> -> vector<128x128xf32>
      %cst_27 = arith.constant 2.000000e-01 : f32
      %31 = vector.broadcast %cst_27 : f32 to vector<128x128xf32>
      %32 = arith.mulf %30, %31 : vector<128x128xf32>
      %33 = arith.mulf %27, %27 : vector<8x128xf32>
      %cst_28 = arith.constant dense<0.000000e+00> : vector<8xf32>
      %34 = vector.multi_reduction <add>, %33, %cst_28 [1] : vector<8x128xf32> to vector<8xf32>
      %35 = vector.shape_cast %34 : vector<8xf32> to vector<8x1xf32>
      %cst_29 = arith.constant 1.000000e+00 : f32
      %36 = vector.broadcast %cst_29 : f32 to vector<1x128xf32>
      %37 = arith.mulf %32, %32 : vector<128x128xf32>
      %cst_30 = arith.constant dense<0.000000e+00> : vector<1x128xf32>
      %38 = tpu.matmul %36, %37, %cst_30 {dimension_numbers = #tpu.dot_dimension_numbers<[1], [1], [0], [0], [0, 0, 1, 0], [], []>} : vector<1x128xf32>, vector<128x128xf32>, vector<1x128xf32> -> vector<1x128xf32>
      %cst_31 = arith.constant dense<0.000000e+00> : vector<8x128xf32>
      %39 = tpu.matmul %27, %32, %cst_31 {dimension_numbers = #tpu.dot_dimension_numbers<[1], [1], [0], [0], [0, 0, 1, 0], [], []>} : vector<8x128xf32>, vector<128x128xf32>, vector<8x128xf32> -> vector<8x128xf32>
      %40 = vector.broadcast %35 : vector<8x1xf32> to vector<8x128xf32>
      %41 = vector.broadcast %38 : vector<1x128xf32> to vector<8x128xf32>
      %42 = arith.addf %40, %41 : vector<8x128xf32>
      %cst_32 = arith.constant 2.000000e+00 : f32
      %43 = vector.broadcast %cst_32 : f32 to vector<8x128xf32>
      %44 = arith.mulf %43, %39 : vector<8x128xf32>
      %45 = arith.subf %42, %44 : vector<8x128xf32>
      %cst_33 = arith.constant 0.000000e+00 : f32
      %46 = vector.broadcast %cst_33 : f32 to vector<8x128xf32>
      %47 = arith.subf %46, %45 : vector<8x128xf32>
      %cst_34 = arith.constant 0.000000e+00 : f32
      %48 = vector.broadcast %cst_34 : f32 to vector<8x128xf32>
      %49 = arith.minimumf %47, %48 : vector<8x128xf32>
      %c0_35 = arith.constant 0 : index
      %c0_36 = arith.constant 0 : index
      %50 = vector.load %arg7[%c0_35, %c0_36] : memref<8x128xf32, #tpu.memory_space<vmem>>, vector<8x128xf32>
      tpu.vector_store %arg7[%c0_35, %c0_36], %49 {strides = array<i32>} : memref<8x128xf32, #tpu.memory_space<vmem>>, vector<8x128xf32>,
    } else {
    }
    return
  }
  func.func @transform_0(%arg0: i32, %arg1: i32) -> (i32, i32) {
    %c0_i32 = arith.constant 0 : i32
    %c0_i32_0 = arith.constant 0 : i32
    return %c0_i32, %arg1 : i32, i32
  }
  func.func @transform_1(%arg0: i32, %arg1: i32) -> (i32, i32) {
    %c0_i32 = arith.constant 0 : i32
    return %arg0, %arg1 : i32, i32
  }
  func.func @transform_2(%arg0: i32, %arg1: i32) -> (i32, i32) {
    %c0_i32 = arith.constant 0 : i32
    %c0_i32_0 = arith.constant 0 : i32
    return %arg1, %c0_i32 : i32, i32
  }
  func.func @transform_3(%arg0: i32, %arg1: i32) -> (i32, i32) {
    %c0_i32 = arith.constant 0 : i32
    %c0_i32_0 = arith.constant 0 : i32
    %c0_i32_1 = arith.constant 0 : i32
    return %c0_i32, %c0_i32_0 : i32, i32
  }
  func.func @transform_4(%arg0: i32, %arg1: i32) -> (i32, i32) {
    %c0_i32 = arith.constant 0 : i32
    %c0_i32_0 = arith.constant 0 : i32
    %c0_i32_1 = arith.constant 0 : i32
    return %c0_i32, %c0_i32_0 : i32, i32
  }
  func.func @transform_5(%arg0: i32, %arg1: i32) -> (i32, i32) {
    %c0_i32 = arith.constant 0 : i32
    %c0_i32_0 = arith.constant 0 : i32
    return %arg0, %c0_i32 : i32, i32
  }
}

</mosaic_0001>

<llo_original>
// kernel: protonet_forward.1
$region0: #{protonet_forward.1}
  #allocation0 [shape = 'u32[]', space=smem, size = 0x4, offset = 0x4, fixed_abs, tag = 'smem constant byte address 0x4 - core index']
  #allocation1 [shape = 'u32[144,128]{1,0:T(1,128)}', space=vmem, size = 0x12000, scoped, tag = 'internal scratch']
  #allocation2 [shape = 'f32[32,128]{1,0:T(8,128)}', space=vmem, size = 0x4000, scoped, tag = 'scratch operand']
  #allocation3 [shape = 'f32[8,128]{1,0:T(8,128)}', space=vmem, size = 0x1000, scoped, tag = 'scratch operand']
  %s0 = inlined_call_operand.vmem [shape: bf16[32,1024], index: 0, kind: input, shape index: {}]
  %s1 = inlined_call_operand.vmem [shape: bf16[8,1024], index: 1, kind: input, shape index: {}]
  %s2 = inlined_call_operand.vmem [shape: bf16[1024,128], index: 2, kind: input, shape index: {}]
  %s3 = inlined_call_operand.vmem [shape: f32[1,128], index: 3, kind: input, shape index: {}]
  %s4 = inlined_call_operand.vmem [shape: bf16[128,32], index: 4, kind: input, shape index: {}]
  %s5 = inlined_call_operand.hbm [shape: f32[8,128], index: 5, kind: output, shape index: {}]
  %s6 = sld [smem:[#allocation0]]
  $region84: #{protonet_forward.1} parent=0
    _
  %s8 = ssub.s32 1, %s6
  %s9 = scalar_select 0, %s8, %s6
  $region1: #{protonet_forward.1} parent=0
    #allocation4 [shape = 'u8[65536]{0}', space=vmem, size = 0x10000, scoped, tag = 'input window, operand 0']
    #allocation5 [shape = 'u8[4096]{0}', space=vmem, size = 0x1000, scoped, tag = 'output window, operand 0, single buffered']
    #allocation6 [shape = 's32[2]{0}', space=sflag, size = 0x8, scoped, tag = 'scoped memory for protonet_forward.1']
    %10 = vsyncpa [#allocation6], 0
    loop: start=0, step=1, limit=4
    $region2: #{protonet_forward.1} parent=1 // loop_pre_header
      _
    $region3: #{protonet_forward.1} parent=1 // loop_header
      %s12 = sphi 0, %s16
      %p13 = scmp.ge.s32.totalorder %s12, 4
      %s19 = sphi 0, %s31
      %s20 = sphi 0, %s27
      %s21 = sphi 0, %s19
      %s22 = sphi 0, %s20
      %s23 = sphi 0, %s21
      %s24 = sphi 0, %s22
      %s34 = sphi 0, %s36
      %s37 = sphi 0, %s34
      %s38 = sphi 0, %s37
      %s54 = sphi 0, %s38
      %s62 = sphi 0, %s64
      %s65 = sphi 0, %s62
      %s66 = sphi 0, %s65
      %s82 = sphi 0, %s66
      %s88 = sphi 0, %s90
      %s91 = sphi 0, %s88
      %s92 = sphi 0, %s91
      %s108 = sphi 0, %s92
      %s112 = sphi 0, %s112
      %s114 = sphi 0, %s112
      %s115 = sphi 0, %s114
      %s129 = sphi 0, %s115
      %s133 = sphi 0, %s133
      %s135 = sphi 0, %s133
      %s136 = sphi 0, %s135
      %s150 = sphi 0, %s136
      %s156 = sphi 0, %s158
      %s159 = sphi 0, %s156
      %s160 = sphi 0, %s159
      %s176 = sphi 0, %s160
    $region4: #{protonet_forward.1} parent=1 // loop_header_branch
      %15 = sbr.rel (%p13) target = $region8
    $region5: #{protonet_forward.1} parent=1 // loop_body
      %s17 = ssub.s32 %s12, 1
      %s18 = ssub.s32 %s12, 2
      %s25 = sadd.s32 1, %s20
      %p26 = scmp.ge.s32.totalorder %s25, 2
      %s27 = scalar_select %p26, 0, %s25
      %s28 = sadd.s32 1, %s19
      %s29 = scalar_select %p26, %s28, %s19
      %p30 = scmp.ge.s32.totalorder %s29, 1
      %s31 = scalar_select %p30, 0, %s29
      %s32 = ssub.s32 %s20, %s27
      %p33 = scmp.eq.s32.totalorder %s32, 0
      %s35 = sadd.s32 %s34, 1
      %s36 = scalar_select %p33, %s34, %s35
      %p39 = pneg %p33
      %p40 = scmp.eq.s32.totalorder %s12, 1
      %p41 = por %p39, %p40
      %p42 = scmp.ne.s32.totalorder %s34, %s37
      %p43 = scmp.eq.s32.totalorder %s12, 0
      %p44 = por %p42, %p43
      %p45 = scmp.ne.s32.totalorder %s34, %s37
      %p46 = scmp.eq.s32.totalorder %s17, 1
      %p47 = por %p45, %p46
      %p48 = scmp.ne.s32.totalorder %s37, %s38
      %p49 = scmp.eq.s32.totalorder %s17, 0
      %p50 = por %p48, %p49
      %p51 = scmp.ne.s32.totalorder %s37, %s38
      %p52 = scmp.eq.s32.totalorder %s18, 1
      %p53 = por %p51, %p52
      %p55 = scmp.ne.s32.totalorder %s38, %s54
      %p56 = scmp.eq.s32.totalorder %s18, 0
      %p57 = por %p55, %p56
      %s58 = ssub.s32 %s19, %s31
      %s59 = ssub.s32 %s20, %s27
      %s60 = sor.u32 %s58, %s59
      %p61 = scmp.eq.s32.totalorder %s60, 0
      %s63 = sadd.s32 %s62, 1
      %s64 = scalar_select %p61, %s62, %s63
      %p67 = pneg %p61
      %p68 = scmp.eq.s32.totalorder %s12, 1
      %p69 = por %p67, %p68
      %p70 = scmp.ne.s32.totalorder %s62, %s65
      %p71 = scmp.eq.s32.totalorder %s12, 0
      %p72 = por %p70, %p71
      %p73 = scmp.ne.s32.totalorder %s62, %s65
      %p74 = scmp.eq.s32.totalorder %s17, 1
      %p75 = por %p73, %p74
      %p76 = scmp.ne.s32.totalorder %s65, %s66
      %p77 = scmp.eq.s32.totalorder %s17, 0
      %p78 = por %p76, %p77
      %p79 = scmp.ne.s32.totalorder %s65, %s66
      %p80 = scmp.eq.s32.totalorder %s18, 1
      %p81 = por %p79, %p80
      %p83 = scmp.ne.s32.totalorder %s66, %s82
      %p84 = scmp.eq.s32.totalorder %s18, 0
      %p85 = por %p83, %p84
      %s86 = ssub.s32 %s20, %s27
      %p87 = scmp.eq.s32.totalorder %s86, 0
      %s89 = sadd.s32 %s88, 1
      %s90 = scalar_select %p87, %s88, %s89
      %p93 = pneg %p87
      %p94 = scmp.eq.s32.totalorder %s12, 1
      %p95 = por %p93, %p94
      %p96 = scmp.ne.s32.totalorder %s88, %s91
      %p97 = scmp.eq.s32.totalorder %s12, 0
      %p98 = por %p96, %p97
      %p99 = scmp.ne.s32.totalorder %s88, %s91
      %p100 = scmp.eq.s32.totalorder %s17, 1
      %p101 = por %p99, %p100
      %p102 = scmp.ne.s32.totalorder %s91, %s92
      %p103 = scmp.eq.s32.totalorder %s17, 0
      %p104 = por %p102, %p103
      %p105 = scmp.ne.s32.totalorder %s91, %s92
      %p106 = scmp.eq.s32.totalorder %s18, 1
      %p107 = por %p105, %p106
      %p109 = scmp.ne.s32.totalorder %s92, %s108
      %p110 = scmp.eq.s32.totalorder %s18, 0
      %p111 = por %p109, %p110
      %s113 = sadd.s32 %s112, 1
      %p116 = scmp.eq.s32.totalorder %s12, 1
      %p117 = scmp.ne.s32.totalorder %s112, %s114
      %p118 = scmp.eq.s32.totalorder %s12, 0
      %p119 = por %p117, %p118
      %p120 = scmp.ne.s32.totalorder %s112, %s114
      %p121 = scmp.eq.s32.totalorder %s17, 1
      %p122 = por %p120, %p121
      %p123 = scmp.ne.s32.totalorder %s114, %s115
      %p124 = scmp.eq.s32.totalorder %s17, 0
      %p125 = por %p123, %p124
      %p126 = scmp.ne.s32.totalorder %s114, %s115
      %p127 = scmp.eq.s32.totalorder %s18, 1
      %p128 = por %p126, %p127
      %p130 = scmp.ne.s32.totalorder %s115, %s129
      %p131 = scmp.eq.s32.totalorder %s18, 0
      %p132 = por %p130, %p131
      %s134 = sadd.s32 %s133, 1
      %p137 = scmp.eq.s32.totalorder %s12, 1
      %p138 = scmp.ne.s32.totalorder %s133, %s135
      %p139 = scmp.eq.s32.totalorder %s12, 0
      %p140 = por %p138, %p139
      %p141 = scmp.ne.s32.totalorder %s133, %s135
      %p142 = scmp.eq.s32.totalorder %s17, 1
      %p143 = por %p141, %p142
      %p144 = scmp.ne.s32.totalorder %s135, %s136
      %p145 = scmp.eq.s32.totalorder %s17, 0
      %p146 = por %p144, %p145
      %p147 = scmp.ne.s32.totalorder %s135, %s136
      %p148 = scmp.eq.s32.totalorder %s18, 1
      %p149 = por %p147, %p148
      %p151 = scmp.ne.s32.totalorder %s136, %s150
      %p152 = scmp.eq.s32.totalorder %s18, 0
      %p153 = por %p151, %p152
      %s154 = ssub.s32 %s19, %s31
      %p155 = scmp.eq.s32.totalorder %s154, 0
      %s157 = sadd.s32 %s156, 1
      %s158 = scalar_select %p155, %s156, %s157
      %p161 = pneg %p155
      %p162 = scmp.eq.s32.totalorder %s12, 1
      %p163 = por %p161, %p162
      %p164 = scmp.ne.s32.totalorder %s156, %s159
      %p165 = scmp.eq.s32.totalorder %s12, 0
      %p166 = por %p164, %p165
      %p167 = scmp.ne.s32.totalorder %s156, %s159
      %p168 = scmp.eq.s32.totalorder %s17, 1
      %p169 = por %p167, %p168
      %p170 = scmp.ne.s32.totalorder %s159, %s160
      %p171 = scmp.eq.s32.totalorder %s17, 0
      %p172 = por %p170, %p171
      %p173 = scmp.ne.s32.totalorder %s159, %s160
      %p174 = scmp.eq.s32.totalorder %s18, 1
      %p175 = por %p173, %p174
      %p177 = scmp.ne.s32.totalorder %s160, %s176
      %p178 = scmp.eq.s32.totalorder %s18, 0
      %p179 = por %p177, %p178
      %p180 = scmp.le.s32.totalorder 1, %s12
      %p181 = scmp.lt.s32.totalorder %s12, 3
      %p182 = pnand %p180, %p181
      %p183 = pneg %p182
      // Predicated region
      $region9: #{protonet_forward.1} parent=5 // pred_check
        _
      $region10: #{protonet_forward.1} parent=5 // pred_check_branch
        %185 = sbr.rel (%p182) target = $region12
      $region11: #{protonet_forward.1} parent=5 // pred_region
        %s186 = ssub.s32 %s12, 1
        // Predicated region
        $region13: #{protonet_forward.1} parent=11 // pred_check
          %p187 = pneg %p125
        $region14: #{protonet_forward.1} parent=11 // pred_check_branch
          %189 = sbr.rel (%p187) target = $region16
        $region15: #{protonet_forward.1} parent=11 // pred_region
          _
        $region16: #{protonet_forward.1} parent=11 // pred_fallthru
          _
        // Predicated region
        $region17: #{protonet_forward.1} parent=11 // pred_check
          %p190 = pneg %p146
        $region18: #{protonet_forward.1} parent=11 // pred_check_branch
          %192 = sbr.rel (%p190) target = $region20
        $region19: #{protonet_forward.1} parent=11 // pred_region
          _
        $region20: #{protonet_forward.1} parent=11 // pred_fallthru
          _
      $region12: #{protonet_forward.1} parent=5 // pred_fallthru
        _
      %p193 = scmp.lt.s32.totalorder %s12, 2
      // Predicated region
      $region21: #{protonet_forward.1} parent=5 // pred_check
        %p194 = pneg %p193
      $region22: #{protonet_forward.1} parent=5 // pred_check_branch
        %196 = sbr.rel (%p194) target = $region24
      $region23: #{protonet_forward.1} parent=5 // pred_region
        // Predicated region
        $region25: #{protonet_forward.1} parent=23 // pred_check
          %p197 = pneg %p44
        $region26: #{protonet_forward.1} parent=23 // pred_check_branch
          %199 = sbr.rel (%p197) target = $region28
        $region27: #{protonet_forward.1} parent=23 // pred_region
          %s200 = sand.u32 %s34, 1
          %s201 = sand.u32 %s34, 1
          %s202 = smul.addr %s201, 64
          %s203 = scalar_lea.vmem [#allocation4], %s202
          %s204 = smul.u32 4, %s20
          %s205 = smul.addr %s204, 4
          %s206 = scalar_lea.vmem %s0, %s205
          // Predicated region
          $region29: #{protonet_forward.1} parent=27 // pred_check
            _
          $region30: #{protonet_forward.1} parent=27 // pred_check_branch
            %208 = sbr.rel (0) target = $region32
          $region31: #{protonet_forward.1} parent=27 // pred_region
            // Predicated region
            $region33: #{protonet_forward.1} parent=31 // pred_check
              _
            $region34: #{protonet_forward.1} parent=31 // pred_check_branch
              %210 = sbr.rel (0) target = $region36
            $region35: #{protonet_forward.1} parent=31 // pred_region
              loop: start=0, step=1, limit=1
              $region37: #{protonet_forward.1} parent=35 // loop_pre_header
                _
              $region38: #{protonet_forward.1} parent=35 // loop_header
                %s212 = sphi 0, %s216
                %p213 = scmp.ge.s32.totalorder %s212, 1
                %s217 = sphi %s206, %s206
                %s218 = sphi %s203, %s203
              $region39: #{protonet_forward.1} parent=35 // loop_header_branch
                %215 = sbr.rel (%p213) target = $region43
              $region40: #{protonet_forward.1} parent=35 // loop_body
                %v219 = vld [vmem:[%s217] sm:$0xff]
                %220 = vst [vmem:[%s218] sm:$0xff] %v219
                %v221 = vld [vmem:[%s217 + $0x8] sm:$0xff]
                %222 = vst [vmem:[%s218 + $0x8] sm:$0xff] %v221
                %v223 = vld [vmem:[%s217 + $0x20] sm:$0xff]
                %224 = vst [vmem:[%s218 + $0x10] sm:$0xff] %v223
                %v225 = vld [vmem:[%s217 + $0x28] sm:$0xff]
                %226 = vst [vmem:[%s218 + $0x18] sm:$0xff] %v225
                %v227 = vld [vmem:[%s217 + $0x40] sm:$0xff]
                %228 = vst [vmem:[%s218 + $0x20] sm:$0xff] %v227
                %v229 = vld [vmem:[%s217 + $0x48] sm:$0xff]
                %230 = vst [vmem:[%s218 + $0x28] sm:$0xff] %v229
                %v231 = vld [vmem:[%s217 + $0x60] sm:$0xff]
                %232 = vst [vmem:[%s218 + $0x30] sm:$0xff] %v231
                %v233 = vld [vmem:[%s217 + $0x68] sm:$0xff]
                %234 = vst [vmem:[%s218 + $0x38] sm:$0xff] %v233
              $region41: #{protonet_forward.1} parent=35 // loop_footer
                %s216 = sadd.s32 1, %s212
              $region42: #{protonet_forward.1} parent=35 // loop_footer_branch
                %211 = sbr.rel target = $region38
              $region43: #{protonet_forward.1} parent=35 // loop_exit
                _
            $region36: #{protonet_forward.1} parent=31 // pred_fallthru
              _
            // Predicated region
            $region44: #{protonet_forward.1} parent=31 // pred_check
              _
            $region45: #{protonet_forward.1} parent=31 // pred_check_branch
              %236 = sbr.rel target = $region47
            $region46: #{protonet_forward.1} parent=31 // pred_region
              _
            $region47: #{protonet_forward.1} parent=31 // pred_fallthru
              _
          $region32: #{protonet_forward.1} parent=27 // pred_fallthru
            _
          %237 = vnop
        $region28: #{protonet_forward.1} parent=23 // pred_fallthru
          _
        // Predicated region
        $region48: #{protonet_forward.1} parent=23 // pred_check
          %p238 = pneg %p72
        $region49: #{protonet_forward.1} parent=23 // pred_check_branch
          %240 = sbr.rel (%p238) target = $region51
        $region50: #{protonet_forward.1} parent=23 // pred_region
          %s241 = smul.u32 4, %s20
          %p242 = scmp.lt.s32.totalorder %s19, 0
          %s243 = scalar_select %p242, %s19, 0
          %p244 = scmp.lt.s32.totalorder %s241, 7
          %s245 = scalar_select %p244, %s241, 7
          %s246 = smul.addr %s243, 8
          %s247 = sadd.s32 %s245, %s246
          %s248 = smul.addr %s247, 4
          %s249 = scalar_lea.vmem %s1, %s248
          %s250 = smul.u32 4, %s20
        $region51: #{protonet_forward.1} parent=23 // pred_fallthru
          _
        // Predicated region
        $region52: #{protonet_forward.1} parent=23 // pred_check
          %p251 = pneg %p98
        $region53: #{protonet_forward.1} parent=23 // pred_check_branch
          %253 = sbr.rel (%p251) target = $region55
        $region54: #{protonet_forward.1} parent=23 // pred_region
          %s254 = smul.u32 64, %s20
          %p255 = scmp.lt.s32.totalorder %s254, 127
          %s256 = scalar_select %p255, %s254, 127
          %s257 = smul.addr %s256, 4
          %s258 = scalar_lea.vmem %s2, %s257
          %s259 = smul.u32 64, %s20
        $region55: #{protonet_forward.1} parent=23 // pred_fallthru
          _
      $region24: #{protonet_forward.1} parent=5 // pred_fallthru
        _
      %p260 = scmp.le.s32.totalorder 1, %s12
      %p261 = scmp.lt.s32.totalorder %s12, 3
      %p262 = pnand %p260, %p261
      %p263 = pneg %p262
      // Predicated region
      $region56: #{protonet_forward.1} parent=5 // pred_check
        _
      $region57: #{protonet_forward.1} parent=5 // pred_check_branch
        %265 = sbr.rel (%p262) target = $region59
      $region58: #{protonet_forward.1} parent=5 // pred_region
        %s266 = ssub.s32 %s12, 1
        %s267 = sand.u32 %s37, 1
        %s268 = sand.u32 %s37, 1
        %s269 = smul.addr %s268, 64
        %s270 = scalar_lea.vmem [#allocation4], %s269
        // Predicated region
        $region60: #{protonet_forward.1} parent=58 // pred_check
          %p271 = pneg %p50
        $region61: #{protonet_forward.1} parent=58 // pred_check_branch
          %273 = sbr.rel (%p271) target = $region63
        $region62: #{protonet_forward.1} parent=58 // pred_region
          _
        $region63: #{protonet_forward.1} parent=58 // pred_fallthru
          _
        %s274 = sand.u32 %s37, 1
        %s275 = sand.u32 %s37, 1
        %s276 = smul.addr %s275, 64
        %s277 = scalar_lea.vmem [#allocation4], %s276
        %p278 = pneg %p50
        %p279 = pneg %p47
        %s280 = smul.u32 4, %s22
        %p281 = scmp.lt.s32.totalorder %s21, 0
        %s282 = scalar_select %p281, %s21, 0
        %p283 = scmp.lt.s32.totalorder %s280, 7
        %s284 = scalar_select %p283, %s280, 7
        %s285 = smul.addr %s282, 8
        %s286 = sadd.s32 %s284, %s285
        %s287 = smul.addr %s286, 4
        %s288 = scalar_lea.vmem %s1, %s287
        %p289 = pneg %p78
        %p290 = pneg %p75
        %s291 = smul.u32 64, %s22
        %p292 = scmp.lt.s32.totalorder %s291, 127
        %s293 = scalar_select %p292, %s291, 127
        %s294 = smul.addr %s293, 4
        %s295 = scalar_lea.vmem %s2, %s294
        %p296 = pneg %p104
        %p297 = pneg %p101
        %p298 = pneg %p125
        %p299 = pneg %p122
        %p300 = pneg %p146
        %p301 = pneg %p143
        %p302 = pneg %p172
        %p303 = pneg %p169
        %s304 = smul.u32 4, %s22
        %s305 = smul.u32 4, %s22
        %p306 = scmp.lt.s32.totalorder %s21, 0
        %s307 = scalar_select %p306, %s21, 0
        %p308 = scmp.lt.s32.totalorder %s305, 7
        %s309 = scalar_select %p308, %s305, 7
        %s310 = smul.addr %s307, 8
        %s311 = sadd.s32 %s309, %s310
        %s312 = smul.addr %s311, 4
        %s313 = scalar_lea.vmem %s1, %s312
        %s314 = smul.u32 4, %s22
        %s315 = smul.u32 64, %s22
        %p316 = scmp.lt.s32.totalorder %s315, 127
        %s317 = scalar_select %p316, %s315, 127
        %s318 = smul.addr %s317, 4
        %s319 = scalar_lea.vmem %s2, %s318
        %s320 = smul.u32 64, %s22
        %p322 = scmp.eq.s32.totalorder %s22, 0
        // Predicated region
        $region64: #{protonet_forward.1} parent=58 // pred_check
          %p323 = pneg %p322
        $region65: #{protonet_forward.1} parent=58 // pred_check_branch
          %325 = sbr.rel (%p323) target = $region67
        $region66: #{protonet_forward.1} parent=58 // pred_region
          %326 = vst [vmem:[#allocation2] sm:$0xff] 0.0
          %327 = vst [vmem:[#allocation2 + $0x8] sm:$0xff] 0.0
          %328 = vst [vmem:[#allocation2 + $0x10] sm:$0xff] 0.0
          %329 = vst [vmem:[#allocation2 + $0x18] sm:$0xff] 0.0
          %330 = vst [vmem:[#allocation3] sm:$0xff] 0.0
        $region67: #{protonet_forward.1} parent=58 // pred_fallthru
          _
        %v331 = vld [vmem:[%s319] sm:$0xf]
        %v332 = vld [vmem:[%s319 + $0x4] sm:$0xf]
        %v333 = vld [vmem:[%s319 + $0x8] sm:$0xf]
        %v334 = vld [vmem:[%s319 + $0xc] sm:$0xf]
        %v335 = vld [vmem:[%s319 + $0x10] sm:$0xf]
        %v336 = vld [vmem:[%s319 + $0x14] sm:$0xf]
        %v337 = vld [vmem:[%s319 + $0x18] sm:$0xf]
        %v338 = vld [vmem:[%s319 + $0x1c] sm:$0xf]
        %v339 = vld [vmem:[%s319 + $0x20] sm:$0xf]
        %v340 = vld [vmem:[%s319 + $0x24] sm:$0xf]
        %v341 = vld [vmem:[%s319 + $0x28] sm:$0xf]
        %v342 = vld [vmem:[%s319 + $0x2c] sm:$0xf]
        %v343 = vld [vmem:[%s319 + $0x30] sm:$0xf]
        %v344 = vld [vmem:[%s319 + $0x34] sm:$0xf]
        %v345 = vld [vmem:[%s319 + $0x38] sm:$0xf]
        %v346 = vld [vmem:[%s319 + $0x3c] sm:$0xf]
        %v347 = vld [vmem:[%s319 + $0x40] sm:$0xf]
        %v348 = vld [vmem:[%s319 + $0x44] sm:$0xf]
        %v349 = vld [vmem:[%s319 + $0x48] sm:$0xf]
        %v350 = vld [vmem:[%s319 + $0x4c] sm:$0xf]
        %v351 = vld [vmem:[%s319 + $0x50] sm:$0xf]
        %v352 = vld [vmem:[%s319 + $0x54] sm:$0xf]
        %v353 = vld [vmem:[%s319 + $0x58] sm:$0xf]
        %v354 = vld [vmem:[%s319 + $0x5c] sm:$0xf]
        %v355 = vld [vmem:[%s319 + $0x60] sm:$0xf]
        %v356 = vld [vmem:[%s319 + $0x64] sm:$0xf]
        %v357 = vld [vmem:[%s319 + $0x68] sm:$0xf]
        %v358 = vld [vmem:[%s319 + $0x6c] sm:$0xf]
        %v359 = vld [vmem:[%s319 + $0x70] sm:$0xf]
        %v360 = vld [vmem:[%s319 + $0x74] sm:$0xf]
        %v361 = vld [vmem:[%s319 + $0x78] sm:$0xf]
        %v362 = vld [vmem:[%s319 + $0x7c] sm:$0xf]
        %v363 = vld [vmem:[%s319 + $0x80] sm:$0xf]
        %v364 = vld [vmem:[%s319 + $0x84] sm:$0xf]
        %v365 = vld [vmem:[%s319 + $0x88] sm:$0xf]
        %v366 = vld [vmem:[%s319 + $0x8c] sm:$0xf]
        %v367 = vld [vmem:[%s319 + $0x90] sm:$0xf]
        %v368 = vld [vmem:[%s319 + $0x94] sm:$0xf]
        %v369 = vld [vmem:[%s319 + $0x98] sm:$0xf]
        %v370 = vld [vmem:[%s319 + $0x9c] sm:$0xf]
        %v371 = vld [vmem:[%s319 + $0xa0] sm:$0xf]
        %v372 = vld [vmem:[%s319 + $0xa4] sm:$0xf]
        %v373 = vld [vmem:[%s319 + $0xa8] sm:$0xf]
        %v374 = vld [vmem:[%s319 + $0xac] sm:$0xf]
        %v375 = vld [vmem:[%s319 + $0xb0] sm:$0xf]
        %v376 = vld [vmem:[%s319 + $0xb4] sm:$0xf]
        %v377 = vld [vmem:[%s319 + $0xb8] sm:$0xf]
        %v378 = vld [vmem:[%s319 + $0xbc] sm:$0xf]
        %v379 = vld [vmem:[%s319 + $0xc0] sm:$0xf]
        %v380 = vld [vmem:[%s319 + $0xc4] sm:$0xf]
        %v381 = vld [vmem:[%s319 + $0xc8] sm:$0xf]
        %v382 = vld [vmem:[%s319 + $0xcc] sm:$0xf]
        %v383 = vld [vmem:[%s319 + $0xd0] sm:$0xf]
        %v384 = vld [vmem:[%s319 + $0xd4] sm:$0xf]
        %v385 = vld [vmem:[%s319 + $0xd8] sm:$0xf]
        %v386 = vld [vmem:[%s319 + $0xdc] sm:$0xf]
        %v387 = vld [vmem:[%s319 + $0xe0] sm:$0xf]
        %v388 = vld [vmem:[%s319 + $0xe4] sm:$0xf]
        %v389 = vld [vmem:[%s319 + $0xe8] sm:$0xf]
        %v390 = vld [vmem:[%s319 + $0xec] sm:$0xf]
        %v391 = vld [vmem:[%s319 + $0xf0] sm:$0xf]
        %v392 = vld [vmem:[%s319 + $0xf4] sm:$0xf]
        %v393 = vld [vmem:[%s319 + $0xf8] sm:$0xf]
        %v394 = vld [vmem:[%s319 + $0xfc] sm:$0xf]
        %v395 = vld [vmem:[#allocation2] sm:$0xff]
        %v396 = vld [vmem:[#allocation2 + $0x8] sm:$0xff]
        %v397 = vld [vmem:[#allocation2 + $0x10] sm:$0xff]
        %v398 = vld [vmem:[#allocation2 + $0x18] sm:$0xff]
        %v399 = vld [vmem:[%s270] sm:$0xff]
        %v400 = vld [vmem:[%s270 + $0x8] sm:$0xff]
        %v401 = vld [vmem:[%s270 + $0x10] sm:$0xff]
        %v402 = vld [vmem:[%s270 + $0x18] sm:$0xff]
        %v403 = vld [vmem:[%s270 + $0x20] sm:$0xff]
        %v404 = vld [vmem:[%s270 + $0x28] sm:$0xff]
        %v405 = vld [vmem:[%s270 + $0x30] sm:$0xff]
        %v406 = vld [vmem:[%s270 + $0x38] sm:$0xff]
        %v415 = vunpack.c.l.b16 %v399
        %v416 = vunpack.c.h.b16 %v399
        %v417 = vunpack.c.l.b16 %v400
        %v418 = vunpack.c.h.b16 %v400
        %v419 = vunpack.c.l.b16 %v401
        %v420 = vunpack.c.h.b16 %v401
        %v421 = vunpack.c.l.b16 %v402
        %v422 = vunpack.c.h.b16 %v402
        %v423 = vunpack.c.l.b16 %v403
        %v424 = vunpack.c.h.b16 %v403
        %v425 = vunpack.c.l.b16 %v404
        %v426 = vunpack.c.h.b16 %v404
        %v427 = vunpack.c.l.b16 %v405
        %v428 = vunpack.c.h.b16 %v405
        %v429 = vunpack.c.l.b16 %v406
        %v430 = vunpack.c.h.b16 %v406
        %v431 = vpack.c.b16 %v419, %v415
        %v432 = vpack.c.b16 %v420, %v416
        %v433 = vpack.c.b16 %v421, %v417
        %v434 = vpack.c.b16 %v422, %v418
        %v435 = vpack.c.b16 %v427, %v423
        %v436 = vpack.c.b16 %v428, %v424
        %v437 = vpack.c.b16 %v429, %v425
        %v438 = vpack.c.b16 %v430, %v426
        %v511 = vunpack.c.l.b16 %v331
        %v512 = vunpack.c.l.b16 %v332
        %v513 = vunpack.c.l.b16 %v333
        %v514 = vunpack.c.l.b16 %v334
        %v515 = vunpack.c.l.b16 %v335
        %v516 = vunpack.c.l.b16 %v336
        %v517 = vunpack.c.l.b16 %v337
        %v518 = vunpack.c.l.b16 %v338
        %v519 = vunpack.c.l.b16 %v339
        %v520 = vunpack.c.l.b16 %v340
        %v521 = vunpack.c.l.b16 %v341
        %v522 = vunpack.c.l.b16 %v342
        %v523 = vunpack.c.l.b16 %v343
        %v524 = vunpack.c.l.b16 %v344
        %v525 = vunpack.c.l.b16 %v345
        %v526 = vunpack.c.l.b16 %v346
        %v527 = vunpack.c.l.b16 %v347
        %v528 = vunpack.c.l.b16 %v348
        %v529 = vunpack.c.l.b16 %v349
        %v530 = vunpack.c.l.b16 %v350
        %v531 = vunpack.c.l.b16 %v351
        %v532 = vunpack.c.l.b16 %v352
        %v533 = vunpack.c.l.b16 %v353
        %v534 = vunpack.c.l.b16 %v354
        %v535 = vunpack.c.l.b16 %v355
        %v536 = vunpack.c.l.b16 %v356
        %v537 = vunpack.c.l.b16 %v357
        %v538 = vunpack.c.l.b16 %v358
        %v539 = vunpack.c.l.b16 %v359
        %v540 = vunpack.c.l.b16 %v360
        %v541 = vunpack.c.l.b16 %v361
        %v542 = vunpack.c.l.b16 %v362
        %v543 = vunpack.c.l.b16 %v363
        %v544 = vunpack.c.l.b16 %v364
        %v545 = vunpack.c.l.b16 %v365
        %v546 = vunpack.c.l.b16 %v366
        %v547 = vunpack.c.l.b16 %v367
        %v548 = vunpack.c.l.b16 %v368
        %v549 = vunpack.c.l.b16 %v369
        %v550 = vunpack.c.l.b16 %v370
        %v551 = vunpack.c.l.b16 %v371
        %v552 = vunpack.c.l.b16 %v372
        %v553 = vunpack.c.l.b16 %v373
        %v554 = vunpack.c.l.b16 %v374
        %v555 = vunpack.c.l.b16 %v375
        %v556 = vunpack.c.l.b16 %v376
        %v557 = vunpack.c.l.b16 %v377
        %v558 = vunpack.c.l.b16 %v378
        %v559 = vunpack.c.l.b16 %v379
        %v560 = vunpack.c.l.b16 %v380
        %v561 = vunpack.c.l.b16 %v381
        %v562 = vunpack.c.l.b16 %v382
        %v563 = vunpack.c.l.b16 %v383
        %v564 = vunpack.c.l.b16 %v384
        %v565 = vunpack.c.l.b16 %v385
        %v566 = vunpack.c.l.b16 %v386
        %v567 = vunpack.c.l.b16 %v387
        %v568 = vunpack.c.l.b16 %v388
        %v569 = vunpack.c.l.b16 %v389
        %v570 = vunpack.c.l.b16 %v390
        %v571 = vunpack.c.l.b16 %v391
        %v572 = vunpack.c.l.b16 %v392
        %v573 = vunpack.c.l.b16 %v393
        %v574 = vunpack.c.l.b16 %v394
        %v575 = vpack.c.b16 %v512, %v511
        %v576 = vpack.c.b16 %v514, %v513
        %v577 = vpack.c.b16 %v516, %v515
        %v578 = vpack.c.b16 %v518, %v517
        %v579 = vpack.c.b16 %v520, %v519
        %v580 = vpack.c.b16 %v522, %v521
        %v581 = vpack.c.b16 %v524, %v523
        %v582 = vpack.c.b16 %v526, %v525
        %v583 = vpack.c.b16 %v528, %v527
        %v584 = vpack.c.b16 %v530, %v529
        %v585 = vpack.c.b16 %v532, %v531
        %v586 = vpack.c.b16 %v534, %v533
        %v587 = vpack.c.b16 %v536, %v535
        %v588 = vpack.c.b16 %v538, %v537
        %v589 = vpack.c.b16 %v540, %v539
        %v590 = vpack.c.b16 %v542, %v541
        %v591 = vpack.c.b16 %v544, %v543
        %v592 = vpack.c.b16 %v546, %v545
        %v593 = vpack.c.b16 %v548, %v547
        %v594 = vpack.c.b16 %v550, %v549
        %v595 = vpack.c.b16 %v552, %v551
        %v596 = vpack.c.b16 %v554, %v553
        %v597 = vpack.c.b16 %v556, %v555
        %v598 = vpack.c.b16 %v558, %v557
        %v599 = vpack.c.b16 %v560, %v559
        %v600 = vpack.c.b16 %v562, %v561
        %v601 = vpack.c.b16 %v564, %v563
        %v602 = vpack.c.b16 %v566, %v565
        %v603 = vpack.c.b16 %v568, %v567
        %v604 = vpack.c.b16 %v570, %v569
        %v605 = vpack.c.b16 %v572, %v571
        %v606 = vpack.c.b16 %v574, %v573
        %639 = vmatprep.subr.bf16.mxu0 0
        %640 = vmatpush1.bf16.msra.mxu0 %v575
        %641 = vmatprep.subr.bf16.mxu0 0
        %642 = vmatpush1.bf16.msra.mxu0 %v576
        %643 = vmatprep.subr.bf16.mxu0 0
        %644 = vmatpush1.bf16.msra.mxu0 %v577
        %645 = vmatprep.subr.bf16.mxu0 0
        %646 = vmatpush1.bf16.msra.mxu0 %v578
        %647 = vmatprep.subr.bf16.mxu0 0
        %648 = vmatpush1.bf16.msra.mxu0 %v579
        %649 = vmatprep.subr.bf16.mxu0 0
        %650 = vmatpush1.bf16.msra.mxu0 %v580
        %651 = vmatprep.subr.bf16.mxu0 0
        %652 = vmatpush1.bf16.msra.mxu0 %v581
        %653 = vmatprep.subr.bf16.mxu0 0
        %654 = vmatpush1.bf16.msra.mxu0 %v582
        %655 = vmatprep.subr.bf16.mxu0 0
        %656 = vmatpush1.bf16.msra.mxu0 %v583
        %657 = vmatprep.subr.bf16.mxu0 0
        %658 = vmatpush1.bf16.msra.mxu0 %v584
        %659 = vmatprep.subr.bf16.mxu0 0
        %660 = vmatpush1.bf16.msra.mxu0 %v585
        %661 = vmatprep.subr.bf16.mxu0 0
        %662 = vmatpush1.bf16.msra.mxu0 %v586
        %663 = vmatprep.subr.bf16.mxu0 0
        %664 = vmatpush1.bf16.msra.mxu0 %v587
        %665 = vmatprep.subr.bf16.mxu0 0
        %666 = vmatpush1.bf16.msra.mxu0 %v588
        %667 = vmatprep.subr.bf16.mxu0 0
        %668 = vmatpush1.bf16.msra.mxu0 %v589
        %669 = vmatprep.subr.bf16.mxu0 0
        %670 = vmatpush1.bf16.msra.mxu0 %v590
        %671 = vmatprep.mubr.bf16.mxu0 %v432
        %672 = vmatmul.mubr.bf16.gmra.mrb[0].mxu0 %v431
        %v673 = vpop.f32.mrb[0].mxu0
        %v674 = vadd.f32 0.0, %v673
        %v675 = vpop.f32.mrb[0].mxu0
        %v676 = vpop.f32.mrb[0].mxu0
        %v677 = vadd.f32 0.0, %v676
        %v678 = vpop.f32.mrb[0].mxu0
        %679 = vmatprep.mubr.bf16.mxu0 %v436
        %680 = vmatmul.mubr.bf16.gmra.mrb[0].mxu0 %v435
        %v681 = vpop.f32.mrb[0].mxu0
        %v682 = vadd.f32 0.0, %v681
        %v683 = vpop.f32.mrb[0].mxu0
        %v684 = vpop.f32.mrb[0].mxu0
        %v685 = vadd.f32 0.0, %v684
        %v686 = vpop.f32.mrb[0].mxu0
        %687 = vdwg.mxu0
        %688 = vmatprep.subr.bf16.mxu0 0
        %689 = vmatpush1.bf16.msra.mxu0 %v591
        %690 = vmatprep.subr.bf16.mxu0 0
        %691 = vmatpush1.bf16.msra.mxu0 %v592
        %692 = vmatprep.subr.bf16.mxu0 0
        %693 = vmatpush1.bf16.msra.mxu0 %v593
        %694 = vmatprep.subr.bf16.mxu0 0
        %695 = vmatpush1.bf16.msra.mxu0 %v594
        %696 = vmatprep.subr.bf16.mxu0 0
        %697 = vmatpush1.bf16.msra.mxu0 %v595
        %698 = vmatprep.subr.bf16.mxu0 0
        %699 = vmatpush1.bf16.msra.mxu0 %v596
        %700 = vmatprep.subr.bf16.mxu0 0
        %701 = vmatpush1.bf16.msra.mxu0 %v597
        %702 = vmatprep.subr.bf16.mxu0 0
        %703 = vmatpush1.bf16.msra.mxu0 %v598
        %704 = vmatprep.subr.bf16.mxu0 0
        %705 = vmatpush1.bf16.msra.mxu0 %v599
        %706 = vmatprep.subr.bf16.mxu0 0
        %707 = vmatpush1.bf16.msra.mxu0 %v600
        %708 = vmatprep.subr.bf16.mxu0 0
        %709 = vmatpush1.bf16.msra.mxu0 %v601
        %710 = vmatprep.subr.bf16.mxu0 0
        %711 = vmatpush1.bf16.msra.mxu0 %v602
        %712 = vmatprep.subr.bf16.mxu0 0
        %713 = vmatpush1.bf16.msra.mxu0 %v603
        %714 = vmatprep.subr.bf16.mxu0 0
        %715 = vmatpush1.bf16.msra.mxu0 %v604
        %716 = vmatprep.subr.bf16.mxu0 0
        %717 = vmatpush1.bf16.msra.mxu0 %v605
        %718 = vmatprep.subr.bf16.mxu0 0
        %719 = vmatpush1.bf16.msra.mxu0 %v606
        %720 = vmatprep.mubr.bf16.mxu0 %v434
        %721 = vmatmul.mubr.bf16.gmra.mrb[0].mxu0 %v433
        %v722 = vpop.f32.mrb[0].mxu0
        %v723 = vadd.f32 %v674, %v722
        %v724 = vpop.f32.mrb[0].mxu0
        %v725 = vpop.f32.mrb[0].mxu0
        %v726 = vadd.f32 %v677, %v725
        %v727 = vpop.f32.mrb[0].mxu0
        %728 = vmatprep.mubr.bf16.mxu0 %v438
        %729 = vmatmul.mubr.bf16.gmra.mrb[0].mxu0 %v437
        %v730 = vpop.f32.mrb[0].mxu0
        %v731 = vadd.f32 %v682, %v730
        %v732 = vpop.f32.mrb[0].mxu0
        %v733 = vpop.f32.mrb[0].mxu0
        %v734 = vadd.f32 %v685, %v733
        %v735 = vpop.f32.mrb[0].mxu0
        %736 = vdwg.mxu0
        %v737 = vadd.f32 %v395, %v723
        %v738 = vadd.f32 %v396, %v726
        %v739 = vadd.f32 %v397, %v731
        %v740 = vadd.f32 %v398, %v734
        %741 = vst [vmem:[#allocation2] sm:$0xff] %v737
        %742 = vst [vmem:[#allocation2 + $0x8] sm:$0xff] %v738
        %743 = vst [vmem:[#allocation2 + $0x10] sm:$0xff] %v739
        %744 = vst [vmem:[#allocation2 + $0x18] sm:$0xff] %v740
        %v745 = vld [vmem:[#allocation3] sm:$0xff]
        %v746 = vld [vmem:[%s313] sm:$0xff]
        %v747 = vld [vmem:[%s313 + $0x8] sm:$0xff]
        %v750 = vunpack.c.l.b16 %v746
        %v751 = vunpack.c.h.b16 %v746
        %v752 = vunpack.c.l.b16 %v747
        %v753 = vunpack.c.h.b16 %v747
        %v754 = vpack.c.b16 %v750, %v750
        %v755 = vpack.c.b16 %v751, %v751
        %v756 = vpack.c.b16 %v752, %v752
        %v757 = vpack.c.b16 %v753, %v753
        %762 = vmatprep.subr.bf16.mxu0 0
        %763 = vmatpush1.bf16.msra.mxu0 %v575
        %764 = vmatprep.subr.bf16.mxu0 0
        %765 = vmatpush1.bf16.msra.mxu0 %v576
        %766 = vmatprep.subr.bf16.mxu0 0
        %767 = vmatpush1.bf16.msra.mxu0 %v577
        %768 = vmatprep.subr.bf16.mxu0 0
        %769 = vmatpush1.bf16.msra.mxu0 %v578
        %770 = vmatprep.subr.bf16.mxu0 0
        %771 = vmatpush1.bf16.msra.mxu0 %v579
        %772 = vmatprep.subr.bf16.mxu0 0
        %773 = vmatpush1.bf16.msra.mxu0 %v580
        %774 = vmatprep.subr.bf16.mxu0 0
        %775 = vmatpush1.bf16.msra.mxu0 %v581
        %776 = vmatprep.subr.bf16.mxu0 0
        %777 = vmatpush1.bf16.msra.mxu0 %v582
        %778 = vmatprep.subr.bf16.mxu0 0
        %779 = vmatpush1.bf16.msra.mxu0 %v583
        %780 = vmatprep.subr.bf16.mxu0 0
        %781 = vmatpush1.bf16.msra.mxu0 %v584
        %782 = vmatprep.subr.bf16.mxu0 0
        %783 = vmatpush1.bf16.msra.mxu0 %v585
        %784 = vmatprep.subr.bf16.mxu0 0
        %785 = vmatpush1.bf16.msra.mxu0 %v586
        %786 = vmatprep.subr.bf16.mxu0 0
        %787 = vmatpush1.bf16.msra.mxu0 %v587
        %788 = vmatprep.subr.bf16.mxu0 0
        %789 = vmatpush1.bf16.msra.mxu0 %v588
        %790 = vmatprep.subr.bf16.mxu0 0
        %791 = vmatpush1.bf16.msra.mxu0 %v589
        %792 = vmatprep.subr.bf16.mxu0 0
        %793 = vmatpush1.bf16.msra.mxu0 %v590
        %794 = vmatprep.mubr.bf16.mxu0 %v755
        %795 = vmatmul.mubr.bf16.gmra.mrb[0].mxu0 %v754
        %v796 = vpop.f32.mrb[0].mxu0
        %v797 = vadd.f32 0.0, %v796
        %v798 = vpop.f32.mrb[0].mxu0
        %v799 = vpop.f32.mrb[0].mxu0
        %v800 = vpop.f32.mrb[0].mxu0
        %801 = vdwg.mxu0
        %802 = vmatprep.subr.bf16.mxu0 0
        %803 = vmatpush1.bf16.msra.mxu0 %v591
        %804 = vmatprep.subr.bf16.mxu0 0
        %805 = vmatpush1.bf16.msra.mxu0 %v592
        %806 = vmatprep.subr.bf16.mxu0 0
        %807 = vmatpush1.bf16.msra.mxu0 %v593
        %808 = vmatprep.subr.bf16.mxu0 0
        %809 = vmatpush1.bf16.msra.mxu0 %v594
        %810 = vmatprep.subr.bf16.mxu0 0
        %811 = vmatpush1.bf16.msra.mxu0 %v595
        %812 = vmatprep.subr.bf16.mxu0 0
        %813 = vmatpush1.bf16.msra.mxu0 %v596
        %814 = vmatprep.subr.bf16.mxu0 0
        %815 = vmatpush1.bf16.msra.mxu0 %v597
        %816 = vmatprep.subr.bf16.mxu0 0
        %817 = vmatpush1.bf16.msra.mxu0 %v598
        %818 = vmatprep.subr.bf16.mxu0 0
        %819 = vmatpush1.bf16.msra.mxu0 %v599
        %820 = vmatprep.subr.bf16.mxu0 0
        %821 = vmatpush1.bf16.msra.mxu0 %v600
        %822 = vmatprep.subr.bf16.mxu0 0
        %823 = vmatpush1.bf16.msra.mxu0 %v601
        %824 = vmatprep.subr.bf16.mxu0 0
        %825 = vmatpush1.bf16.msra.mxu0 %v602
        %826 = vmatprep.subr.bf16.mxu0 0
        %827 = vmatpush1.bf16.msra.mxu0 %v603
        %828 = vmatprep.subr.bf16.mxu0 0
        %829 = vmatpush1.bf16.msra.mxu0 %v604
        %830 = vmatprep.subr.bf16.mxu0 0
        %831 = vmatpush1.bf16.msra.mxu0 %v605
        %832 = vmatprep.subr.bf16.mxu0 0
        %833 = vmatpush1.bf16.msra.mxu0 %v606
        %834 = vmatprep.mubr.bf16.mxu0 %v757
        %835 = vmatmul.mubr.bf16.gmra.mrb[0].mxu0 %v756
        %v836 = vpop.f32.mrb[0].mxu0
        %v837 = vadd.f32 %v797, %v836
        %v838 = vpop.f32.mrb[0].mxu0
        %v839 = vpop.f32.mrb[0].mxu0
        %v840 = vpop.f32.mrb[0].mxu0
        %841 = vdwg.mxu0
        %v842 = vadd.f32 %v745, %v837
        %843 = vst [vmem:[#allocation3] sm:$0xff] %v842
        %p844 = scmp.eq.s32.totalorder %s22, 1
        // Predicated region
        $region68: #{protonet_forward.1} parent=58 // pred_check
          %p845 = pneg %p844
        $region69: #{protonet_forward.1} parent=58 // pred_check_branch
          %847 = sbr.rel (%p845) target = $region71
        $region70: #{protonet_forward.1} parent=58 // pred_region
          %v848 = vld [vmem:[%s3] sm:$0x1]
          %v849 = vld [vmem:[#allocation2] sm:$0xff]
          %v850 = vld [vmem:[#allocation2 + $0x8] sm:$0xff]
          %v851 = vld [vmem:[#allocation2 + $0x10] sm:$0xff]
          %v852 = vld [vmem:[#allocation2 + $0x18] sm:$0xff]
          %v854 = vlaneseq
          %v855 = vshrl.u32 %v854, 7
          %v856 = vsub.s32 0, %v855
          %v857 = vrot.slane %v848, %v856
          %v859 = vadd.f32 %v849, %v857
          %v860 = vadd.f32 %v850, %v857
          %v861 = vadd.f32 %v851, %v857
          %v862 = vadd.f32 %v852, %v857
          %v863 = vmax.f32 %v859, 0.0
          %v864 = vmax.f32 %v860, 0.0
          %v865 = vmax.f32 %v861, 0.0
          %v866 = vmax.f32 %v862, 0.0
          %v867 = vld [vmem:[#allocation3] sm:$0xff]
          %v868 = vadd.f32 %v867, %v857
          %v869 = vmax.f32 %v868, 0.0
          %v870 = vld [vmem:[%s4] sm:$0xf]
          %v871 = vld [vmem:[%s4 + $0x4] sm:$0xf]
          %v872 = vld [vmem:[%s4 + $0x8] sm:$0xf]
          %v873 = vld [vmem:[%s4 + $0xc] sm:$0xf]
          %v874 = vld [vmem:[%s4 + $0x10] sm:$0xf]
          %v875 = vld [vmem:[%s4 + $0x14] sm:$0xf]
          %v876 = vld [vmem:[%s4 + $0x18] sm:$0xf]
          %v877 = vld [vmem:[%s4 + $0x1c] sm:$0xf]
          %v878 = vld [vmem:[%s4 + $0x20] sm:$0xf]
          %v879 = vld [vmem:[%s4 + $0x24] sm:$0xf]
          %v880 = vld [vmem:[%s4 + $0x28] sm:$0xf]
          %v881 = vld [vmem:[%s4 + $0x2c] sm:$0xf]
          %v882 = vld [vmem:[%s4 + $0x30] sm:$0xf]
          %v883 = vld [vmem:[%s4 + $0x34] sm:$0xf]
          %v884 = vld [vmem:[%s4 + $0x38] sm:$0xf]
          %v885 = vld [vmem:[%s4 + $0x3c] sm:$0xf]
          %v886 = vpack.c.bf16 %v864, %v863
          %v887 = vpack.c.bf16 %v866, %v865
          %v904 = vunpack.c.l.b16 %v870
          %v905 = vunpack.c.l.b16 %v871
          %v906 = vunpack.c.l.b16 %v872
          %v907 = vunpack.c.l.b16 %v873
          %v908 = vunpack.c.l.b16 %v874
          %v909 = vunpack.c.l.b16 %v875
          %v910 = vunpack.c.l.b16 %v876
          %v911 = vunpack.c.l.b16 %v877
          %v912 = vunpack.c.l.b16 %v878
          %v913 = vunpack.c.l.b16 %v879
          %v914 = vunpack.c.l.b16 %v880
          %v915 = vunpack.c.l.b16 %v881
          %v916 = vunpack.c.l.b16 %v882
          %v917 = vunpack.c.l.b16 %v883
          %v918 = vunpack.c.l.b16 %v884
          %v919 = vunpack.c.l.b16 %v885
          %v920 = vpack.c.b16 %v905, %v904
          %v921 = vpack.c.b16 %v907, %v906
          %v922 = vpack.c.b16 %v909, %v908
          %v923 = vpack.c.b16 %v911, %v910
          %v924 = vpack.c.b16 %v913, %v912
          %v925 = vpack.c.b16 %v915, %v914
          %v926 = vpack.c.b16 %v917, %v916
          %v927 = vpack.c.b16 %v919, %v918
          %vm928 = vcmask 261120
          %v930 = vsel %vm928, %v920, 0
          %v933 = vsel %vm928, %v921, 0
          %v936 = vsel %vm928, %v922, 0
          %v939 = vsel %vm928, %v923, 0
          %v942 = vsel %vm928, %v924, 0
          %v945 = vsel %vm928, %v925, 0
          %v948 = vsel %vm928, %v926, 0
          %v951 = vsel %vm928, %v927, 0
          %953 = vmatprep.subr.bf16.mxu0 0
          %954 = vmatpush1.bf16.msra.mxu0 %v886
          %955 = vmatprep.subr.bf16.mxu0 0
          %956 = vmatpush1.bf16.msra.mxu0 %v887
          %957 = vmatprep.subr.bf16.mxu0 0
          %958 = vmatpush1.bf16.msra.mxu0 0
          %959 = vmatprep.subr.bf16.mxu0 0
          %960 = vmatpush1.bf16.msra.mxu0 0
          %961 = vmatprep.subr.bf16.mxu0 0
          %962 = vmatpush1.bf16.msra.mxu0 0
          %963 = vmatprep.subr.bf16.mxu0 0
          %964 = vmatpush1.bf16.msra.mxu0 0
          %965 = vmatprep.subr.bf16.mxu0 0
          %966 = vmatpush1.bf16.msra.mxu0 0
          %967 = vmatprep.subr.bf16.mxu0 0
          %968 = vmatpush1.bf16.msra.mxu0 0
          %969 = vmatprep.subr.bf16.mxu0 0
          %970 = vmatpush1.bf16.msra.mxu0 0
          %971 = vmatprep.subr.bf16.mxu0 0
          %972 = vmatpush1.bf16.msra.mxu0 0
          %973 = vmatprep.subr.bf16.mxu0 0
          %974 = vmatpush1.bf16.msra.mxu0 0
          %975 = vmatprep.subr.bf16.mxu0 0
          %976 = vmatpush1.bf16.msra.mxu0 0
          %977 = vmatprep.subr.bf16.mxu0 0
          %978 = vmatpush1.bf16.msra.mxu0 0
          %979 = vmatprep.subr.bf16.mxu0 0
          %980 = vmatpush1.bf16.msra.mxu0 0
          %981 = vmatprep.subr.bf16.mxu0 0
          %982 = vmatpush1.bf16.msra.mxu0 0
          %983 = vmatprep.subr.bf16.mxu0 0
          %984 = vmatpush1.bf16.msra.mxu0 0
          %985 = vmatprep.mubr.bf16.mxu0 0
          %986 = vmatmul.mubr.bf16.gmra.mrb[0].mxu0 %v930
          %v987 = vpop.f32.mrb[0].mxu0
          %v988 = vadd.f32 0.0, %v987
          %v989 = vpop.f32.mrb[0].mxu0
          %v990 = vpop.f32.mrb[0].mxu0
          %v991 = vadd.f32 0.0, %v990
          %v992 = vpop.f32.mrb[0].mxu0
          %993 = vmatprep.mubr.bf16.mxu0 0
          %994 = vmatmul.mubr.bf16.gmra.mrb[0].mxu0 %v933
          %v995 = vpop.f32.mrb[0].mxu0
          %v996 = vadd.f32 0.0, %v995
          %v997 = vpop.f32.mrb[0].mxu0
          %v998 = vpop.f32.mrb[0].mxu0
          %v999 = vadd.f32 0.0, %v998
          %v1000 = vpop.f32.mrb[0].mxu0
          %1001 = vmatprep.mubr.bf16.mxu0 0
          %1002 = vmatmul.mubr.bf16.gmra.mrb[0].mxu0 %v936
          %v1003 = vpop.f32.mrb[0].mxu0
          %v1004 = vadd.f32 0.0, %v1003
          %v1005 = vpop.f32.mrb[0].mxu0
          %v1006 = vpop.f32.mrb[0].mxu0
          %v1007 = vadd.f32 0.0, %v1006
          %v1008 = vpop.f32.mrb[0].mxu0
          %1009 = vmatprep.mubr.bf16.mxu0 0
          %1010 = vmatmul.mubr.bf16.gmra.mrb[0].mxu0 %v939
          %v1011 = vpop.f32.mrb[0].mxu0
          %v1012 = vadd.f32 0.0, %v1011
          %v1013 = vpop.f32.mrb[0].mxu0
          %v1014 = vpop.f32.mrb[0].mxu0
          %v1015 = vadd.f32 0.0, %v1014
          %v1016 = vpop.f32.mrb[0].mxu0
          %1017 = vmatprep.mubr.bf16.mxu0 0
          %1018 = vmatmul.mubr.bf16.gmra.mrb[0].mxu0 %v942
          %v1019 = vpop.f32.mrb[0].mxu0
          %v1020 = vadd.f32 0.0, %v1019
          %v1021 = vpop.f32.mrb[0].mxu0
          %v1022 = vpop.f32.mrb[0].mxu0
          %v1023 = vadd.f32 0.0, %v1022
          %v1024 = vpop.f32.mrb[0].mxu0
          %1025 = vmatprep.mubr.bf16.mxu0 0
          %1026 = vmatmul.mubr.bf16.gmra.mrb[0].mxu0 %v945
          %v1027 = vpop.f32.mrb[0].mxu0
          %v1028 = vadd.f32 0.0, %v1027
          %v1029 = vpop.f32.mrb[0].mxu0
          %v1030 = vpop.f32.mrb[0].mxu0
          %v1031 = vadd.f32 0.0, %v1030
          %v1032 = vpop.f32.mrb[0].mxu0
          %1033 = vmatprep.mubr.bf16.mxu0 0
          %1034 = vmatmul.mubr.bf16.gmra.mrb[0].mxu0 %v948
          %v1035 = vpop.f32.mrb[0].mxu0
          %v1036 = vadd.f32 0.0, %v1035
          %v1037 = vpop.f32.mrb[0].mxu0
          %v1038 = vpop.f32.mrb[0].mxu0
          %v1039 = vadd.f32 0.0, %v1038
          %v1040 = vpop.f32.mrb[0].mxu0
          %1041 = vmatprep.mubr.bf16.mxu0 0
          %1042 = vmatmul.mubr.bf16.gmra.mrb[0].mxu0 %v951
          %v1043 = vpop.f32.mrb[0].mxu0
          %v1044 = vadd.f32 0.0, %v1043
          %v1045 = vpop.f32.mrb[0].mxu0
          %v1046 = vpop.f32.mrb[0].mxu0
          %v1047 = vadd.f32 0.0, %v1046
          %v1048 = vpop.f32.mrb[0].mxu0
          %1049 = vdwg.mxu0
          %v1050 = vmul.f32 %v988, 0.2
          %v1051 = vmul.f32 %v991, 0.2
          %v1052 = vmul.f32 %v996, 0.2
          %v1053 = vmul.f32 %v999, 0.2
          %v1054 = vmul.f32 %v1004, 0.2
          %v1055 = vmul.f32 %v1007, 0.2
          %v1056 = vmul.f32 %v1012, 0.2
          %v1057 = vmul.f32 %v1015, 0.2
          %v1058 = vmul.f32 %v1020, 0.2
          %v1059 = vmul.f32 %v1023, 0.2
          %v1060 = vmul.f32 %v1028, 0.2
          %v1061 = vmul.f32 %v1031, 0.2
          %v1062 = vmul.f32 %v1036, 0.2
          %v1063 = vmul.f32 %v1039, 0.2
          %v1064 = vmul.f32 %v1044, 0.2
          %v1065 = vmul.f32 %v1047, 0.2
          %v1066 = vmul.f32 %v869, %v869
          %1067 = vadd.xlane.f32.xlu0 %v1066
          %v1068 = vpop.xlane.xlu0 %1067
          %v1069 = vmul.f32 %v1050, %v1050
          %v1070 = vmul.f32 %v1051, %v1051
          %v1071 = vmul.f32 %v1052, %v1052
          %v1072 = vmul.f32 %v1053, %v1053
          %v1073 = vmul.f32 %v1054, %v1054
          %v1074 = vmul.f32 %v1055, %v1055
          %v1075 = vmul.f32 %v1056, %v1056
          %v1076 = vmul.f32 %v1057, %v1057
          %v1077 = vmul.f32 %v1058, %v1058
          %v1078 = vmul.f32 %v1059, %v1059
          %v1079 = vmul.f32 %v1060, %v1060
          %v1080 = vmul.f32 %v1061, %v1061
          %v1081 = vmul.f32 %v1062, %v1062
          %v1082 = vmul.f32 %v1063, %v1063
          %v1083 = vmul.f32 %v1064, %v1064
          %v1084 = vmul.f32 %v1065, %v1065
          %1085 = vmatprep.subr.mxu0 0.0
          %1086 = vmatpush1.xpose.msra.mxu0 %v1069
          %1087 = vmatprep.subr.mxu0 0.0
          %1088 = vmatpush1.xpose.msra.mxu0 %v1070
          %1089 = vmatprep.subr.mxu0 0.0
          %1090 = vmatpush1.xpose.msra.mxu0 %v1071
          %1091 = vmatprep.subr.mxu0 0.0
          %1092 = vmatpush1.xpose.msra.mxu0 %v1072
          %1093 = vmatprep.subr.mxu0 0.0
          %1094 = vmatpush1.xpose.msra.mxu0 %v1073
          %1095 = vmatprep.subr.mxu0 0.0
          %1096 = vmatpush1.xpose.msra.mxu0 %v1074
          %1097 = vmatprep.subr.mxu0 0.0
          %1098 = vmatpush1.xpose.msra.mxu0 %v1075
          %1099 = vmatprep.subr.mxu0 0.0
          %1100 = vmatpush1.xpose.msra.mxu0 %v1076
          %1101 = vmatprep.subr.mxu0 0.0
          %1102 = vmatpush1.xpose.msra.mxu0 %v1077
          %1103 = vmatprep.subr.mxu0 0.0
          %1104 = vmatpush1.xpose.msra.mxu0 %v1078
          %1105 = vmatprep.subr.mxu0 0.0
          %1106 = vmatpush1.xpose.msra.mxu0 %v1079
          %1107 = vmatprep.subr.mxu0 0.0
          %1108 = vmatpush1.xpose.msra.mxu0 %v1080
          %1109 = vmatprep.subr.mxu0 0.0
          %1110 = vmatpush1.xpose.msra.mxu0 %v1081
          %1111 = vmatprep.subr.mxu0 0.0
          %1112 = vmatpush1.xpose.msra.mxu0 %v1082
          %1113 = vmatprep.subr.mxu0 0.0
          %1114 = vmatpush1.xpose.msra.mxu0 %v1083
          %1115 = vmatprep.subr.mxu0 0.0
          %1116 = vmatpush1.xpose.msra.mxu0 %v1084
          %1117 = vmatprep.subr.mxu0 0.0
          %1118 = vmatpush1.xpose.msra.mxu0 0.0
          %1119 = vmatprep.subr.mxu0 0.0
          %1120 = vmatpush1.xpose.msra.mxu0 0.0
          %1121 = vmatprep.subr.mxu0 0.0
          %1122 = vmatpush1.xpose.msra.mxu0 0.0
          %1123 = vmatprep.subr.mxu0 0.0
          %1124 = vmatpush1.xpose.msra.mxu0 0.0
          %1125 = vmatprep.subr.mxu0 0.0
          %1126 = vmatpush1.xpose.msra.mxu0 0.0
          %1127 = vmatprep.subr.mxu0 0.0
          %1128 = vmatpush1.xpose.msra.mxu0 0.0
          %1129 = vmatprep.subr.mxu0 0.0
          %1130 = vmatpush1.xpose.msra.mxu0 0.0
          %1131 = vmatprep.subr.mxu0 0.0
          %1132 = vmatpush1.xpose.msra.mxu0 0.0
          %1133 = vmatprep.subr.mxu0 0.0
          %1134 = vmatpush1.xpose.msra.mxu0 0.0
          %1135 = vmatprep.subr.mxu0 0.0
          %1136 = vmatpush1.xpose.msra.mxu0 0.0
          %1137 = vmatprep.subr.mxu0 0.0
          %1138 = vmatpush1.xpose.msra.mxu0 0.0
          %1139 = vmatprep.subr.mxu0 0.0
          %1140 = vmatpush1.xpose.msra.mxu0 0.0
          %1141 = vmatprep.subr.mxu0 0.0
          %1142 = vmatpush1.xpose.msra.mxu0 0.0
          %1143 = vmatprep.subr.mxu0 0.0
          %1144 = vmatpush1.xpose.msra.mxu0 0.0
          %1145 = vmatprep.subr.mxu0 0.0
          %1146 = vmatpush1.xpose.msra.mxu0 0.0
          %1147 = vmatprep.subr.mxu0 0.0
          %1148 = vmatpush1.xpose.msra.mxu0 0.0
          %1149 = vmatprep.mubr.f32.mxu0 0.0
          %1150 = vmatmul.mubr.f32.gmra.mrb[0].mxu0 1.0
          %v1151 = vpop.f32.mrb[0].mxu0
          %v1152 = vadd.f32 0.0, %v1151
          %v1153 = vpop.f32.mrb[0].mxu0
          %1154 = vdwg.mxu0
          %1155 = vmatprep.subr.mxu0 0.0
          %1156 = vmatpush1.xpose.msra.mxu0 %v1050
          %1157 = vmatprep.subr.mxu0 0.0
          %1158 = vmatpush1.xpose.msra.mxu0 %v1051
          %1159 = vmatprep.subr.mxu0 0.0
          %1160 = vmatpush1.xpose.msra.mxu0 %v1052
          %1161 = vmatprep.subr.mxu0 0.0
          %1162 = vmatpush1.xpose.msra.mxu0 %v1053
          %1163 = vmatprep.subr.mxu0 0.0
          %1164 = vmatpush1.xpose.msra.mxu0 %v1054
          %1165 = vmatprep.subr.mxu0 0.0
          %1166 = vmatpush1.xpose.msra.mxu0 %v1055
          %1167 = vmatprep.subr.mxu0 0.0
          %1168 = vmatpush1.xpose.msra.mxu0 %v1056
          %1169 = vmatprep.subr.mxu0 0.0
          %1170 = vmatpush1.xpose.msra.mxu0 %v1057
          %1171 = vmatprep.subr.mxu0 0.0
          %1172 = vmatpush1.xpose.msra.mxu0 %v1058
          %1173 = vmatprep.subr.mxu0 0.0
          %1174 = vmatpush1.xpose.msra.mxu0 %v1059
          %1175 = vmatprep.subr.mxu0 0.0
          %1176 = vmatpush1.xpose.msra.mxu0 %v1060
          %1177 = vmatprep.subr.mxu0 0.0
          %1178 = vmatpush1.xpose.msra.mxu0 %v1061
          %1179 = vmatprep.subr.mxu0 0.0
          %1180 = vmatpush1.xpose.msra.mxu0 %v1062
          %1181 = vmatprep.subr.mxu0 0.0
          %1182 = vmatpush1.xpose.msra.mxu0 %v1063
          %1183 = vmatprep.subr.mxu0 0.0
          %1184 = vmatpush1.xpose.msra.mxu0 %v1064
          %1185 = vmatprep.subr.mxu0 0.0
          %1186 = vmatpush1.xpose.msra.mxu0 %v1065
          %1187 = vmatprep.subr.mxu0 0.0
          %1188 = vmatpush1.xpose.msra.mxu0 0.0
          %1189 = vmatprep.subr.mxu0 0.0
          %1190 = vmatpush1.xpose.msra.mxu0 0.0
          %1191 = vmatprep.subr.mxu0 0.0
          %1192 = vmatpush1.xpose.msra.mxu0 0.0
          %1193 = vmatprep.subr.mxu0 0.0
          %1194 = vmatpush1.xpose.msra.mxu0 0.0
          %1195 = vmatprep.subr.mxu0 0.0
          %1196 = vmatpush1.xpose.msra.mxu0 0.0
          %1197 = vmatprep.subr.mxu0 0.0
          %1198 = vmatpush1.xpose.msra.mxu0 0.0
          %1199 = vmatprep.subr.mxu0 0.0
          %1200 = vmatpush1.xpose.msra.mxu0 0.0
          %1201 = vmatprep.subr.mxu0 0.0
          %1202 = vmatpush1.xpose.msra.mxu0 0.0
          %1203 = vmatprep.subr.mxu0 0.0
          %1204 = vmatpush1.xpose.msra.mxu0 0.0
          %1205 = vmatprep.subr.mxu0 0.0
          %1206 = vmatpush1.xpose.msra.mxu0 0.0
          %1207 = vmatprep.subr.mxu0 0.0
          %1208 = vmatpush1.xpose.msra.mxu0 0.0
          %1209 = vmatprep.subr.mxu0 0.0
          %1210 = vmatpush1.xpose.msra.mxu0 0.0
          %1211 = vmatprep.subr.mxu0 0.0
          %1212 = vmatpush1.xpose.msra.mxu0 0.0
          %1213 = vmatprep.subr.mxu0 0.0
          %1214 = vmatpush1.xpose.msra.mxu0 0.0
          %1215 = vmatprep.subr.mxu0 0.0
          %1216 = vmatpush1.xpose.msra.mxu0 0.0
          %1217 = vmatprep.subr.mxu0 0.0
          %1218 = vmatpush1.xpose.msra.mxu0 0.0
          %1219 = vmatprep.mubr.f32.mxu0 0.0
          %1220 = vmatmul.mubr.f32.gmra.mrb[0].mxu0 %v869
          %v1221 = vpop.f32.mrb[0].mxu0
          %v1222 = vadd.f32 0.0, %v1221
          %v1223 = vpop.f32.mrb[0].mxu0
          %1224 = vdwg.mxu0
          %v1225 = vlaneseq
          %v1226 = vshrl.u32 %v1225, 7
          %v1227 = vsub.s32 0, %v1226
          %v1228 = vrot.slane %v1152, %v1227
          %v1229 = vadd.f32 %v1068, %v1228
          %v1230 = vmul.f32 %v1222, 2.0
          %v1231 = vsub.f32 %v1229, %v1230
          %v1232 = vsub.f32 0.0, %v1231
          %v1233 = vmin.f32 %v1232, 0.0
          %1234 = vst [vmem:[#allocation5] sm:$0xff] %v1233
        $region71: #{protonet_forward.1} parent=58 // pred_fallthru
          _
        // Predicated region
        $region72: #{protonet_forward.1} parent=58 // pred_check
          %p1235 = pneg %p169
        $region73: #{protonet_forward.1} parent=58 // pred_check_branch
          %1237 = sbr.rel (%p1235) target = $region75
        $region74: #{protonet_forward.1} parent=58 // pred_region
          %s1239 = ssub.s32 128, 128
          %1240 = vsyncadd [#allocation6], %s1239
          %s1241 = smul.addr %s21, 128
          %s1242 = scalar_lea.hbm %s5, %s1241
          %s1244 = sshll.u32 [#allocation5], 4
          %s1245 = int_to_ptr.vmem [resolvable:$true] %s1244
          %1247 = dma.vmem_to_hbm [thread:$0]  %s1245, 128, %s1242, [#allocation6]
        $region75: #{protonet_forward.1} parent=58 // pred_fallthru
          _
        // Predicated region
        $region76: #{protonet_forward.1} parent=58 // pred_check
          %p1248 = pneg %p169
        $region77: #{protonet_forward.1} parent=58 // pred_check_branch
          %1250 = sbr.rel (%p1248) target = $region79
        $region78: #{protonet_forward.1} parent=58 // pred_region
          %1251 = dma.done [#allocation6], 128
        $region79: #{protonet_forward.1} parent=58 // pred_fallthru
          _
      $region59: #{protonet_forward.1} parent=5 // pred_fallthru
        _
      %p1252 = scmp.le.s32.totalorder 2, %s12
      // Predicated region
      $region80: #{protonet_forward.1} parent=5 // pred_check
        %p1253 = pneg %p1252
      $region81: #{protonet_forward.1} parent=5 // pred_check_branch
        %1255 = sbr.rel (%p1253) target = $region83
      $region82: #{protonet_forward.1} parent=5 // pred_region
        %s1256 = ssub.s32 %s12, 2
      $region83: #{protonet_forward.1} parent=5 // pred_fallthru
        _
    $region6: #{protonet_forward.1} parent=1 // loop_footer
      %s16 = sadd.s32 1, %s12
    $region7: #{protonet_forward.1} parent=1 // loop_footer_branch
      %11 = sbr.rel target = $region3
    $region8: #{protonet_forward.1} parent=1 // loop_exit
      _
    %1257 = vsyncpa [#allocation6], 1
    %s1258 = scalar_lea.sflag [#allocation6], 1
    %1259 = vsyncpa %s1258, 1

</llo_original>
